<compile_context>
chip_gen: v7x
topology: tpu7x:2x2x1
jax: 0.10.0
libtpu: 0.0.40
codegen_flags: <defaults>
</compile_context>

<pallas_src>
import math
import functools

import jax
import jax.numpy as jnp
from jax.experimental import pallas as pl
from jax.experimental.pallas import tpu as pltpu

_HALF_LOG_2PI = 0.5 * math.log(2.0 * math.pi)

# Lanczos coefficients (g = 7, n = 9)
_LANCZOS_C0 = 0.99999999999980993
_LANCZOS_COEFS = (
    676.5203681218851,
    -1259.1392167224028,
    771.32342877765313,
    -176.61502916214059,
    12.507343278686905,
    -0.13857109526572012,
    9.9843695780195716e-6,
    1.5056327351493116e-7,
)


def _lgamma(x):
    """log Gamma(x) via Lanczos approximation; valid for x >= 1 (our domain).

    Reciprocal series terms are pairwise-combined: 4 f32 divides instead of 8.
    Used only on [T, 1] quantities (strength / target-class alpha).
    """
    a = jnp.full_like(x, _LANCZOS_C0)
    for i in range(0, len(_LANCZOS_COEFS), 2):
        c0 = _LANCZOS_COEFS[i]
        c1 = _LANCZOS_COEFS[i + 1]
        d0 = x + float(i)
        d1 = x + float(i + 1)
        a = a + (c0 * d1 + c1 * d0) / (d0 * d1)
    t = x + 6.5
    return _HALF_LOG_2PI + (x - 0.5) * jnp.log(t) - t + jnp.log(a)


def _digamma(x):
    """digamma(x) via recurrence + asymptotic series; valid for x >= 1.

    Recurrence terms pairwise-combined: 3 f32 divides instead of 6.
    Used only on [T, 1] quantities.
    """
    res = jnp.zeros_like(x)
    for i in range(0, 6, 2):
        d0 = x + float(i)
        d1 = x + float(i + 1)
        res = res - (d0 + d1) / (d0 * d1)
    y = x + 6.0
    inv = 1.0 / y
    inv2 = inv * inv
    tail = inv2 * (1.0 / 12.0 - inv2 * (1.0 / 120.0 - inv2 * (1.0 / 252.0)))
    return res + jnp.log(y) - 0.5 * inv - tail


def _lgamma_digamma(x):
    """Fused lgamma(x) AND digamma(x) for x >= 1, sharing work on the [T, C] path.

    The Lanczos series denominators (x+i) for i=0..5 are the same ones used by
    the digamma recurrence, so the pairwise reciprocals are computed once and
    reused: 5 f32 divides per element instead of 8 (separate evaluation).
    """
    lg_a = jnp.full_like(x, _LANCZOS_C0)
    dg = jnp.zeros_like(x)
    for i in range(0, 6, 2):            # pairs shared by both series
        c0 = _LANCZOS_COEFS[i]
        c1 = _LANCZOS_COEFS[i + 1]
        d0 = x + float(i)
        d1 = x + float(i + 1)
        r = 1.0 / (d0 * d1)
        lg_a = lg_a + (c0 * d1 + c1 * d0) * r
        dg = dg - (d0 + d1) * r
    # Final Lanczos pair (i = 6, 7): lgamma-only.
    c0 = _LANCZOS_COEFS[6]
    c1 = _LANCZOS_COEFS[7]
    d0 = x + 6.0
    d1 = x + 7.0
    lg_a = lg_a + (c0 * d1 + c1 * d0) / (d0 * d1)

    t = x + 6.5
    lgamma = _HALF_LOG_2PI + (x - 0.5) * jnp.log(t) - t + jnp.log(lg_a)

    y = d0                               # x + 6.0, reused from the last pair
    inv = 1.0 / y
    inv2 = inv * inv
    tail = inv2 * (1.0 / 12.0 - inv2 * (1.0 / 120.0 - inv2 * (1.0 / 252.0)))
    digamma = dg + jnp.log(y) - 0.5 * inv - tail
    return lgamma, digamma


def _dec_loss_kernel(ev_ref, tgt_ref, out_ref, *, loss_type, reduction,
                     annealing_coef, num_classes, tile_n, total_n, needs_mask):
    ev = jnp.maximum(ev_ref[...].astype(jnp.float32), 0.0)        # relu
    alpha = ev + 1.0                                              # [T, C]
    strength = jnp.sum(alpha, axis=-1, keepdims=True)             # [T, 1]

    # One-hot mask built in-kernel from int32 class ids (no one-hot DMA).
    tgt = tgt_ref[...]                                            # [T, 1] int32
    class_ids = jax.lax.broadcasted_iota(jnp.int32, (tile_n, num_classes), 1)
    mask = class_ids == tgt                                       # [T, C] bool

    # alpha at the target class -> transcendental work is [T,1], not [T,C].
    alpha_t = jnp.sum(jnp.where(mask, alpha, 0.0), axis=-1, keepdims=True)

    if loss_type == "log":
        loss_dirichlet = jnp.log(strength) - jnp.log(alpha_t)
    elif loss_type == "mse":
        inv_strength = 1.0 / strength                             # 1 div / row
        p = alpha * inv_strength
        ll_err = jnp.sum((mask.astype(jnp.float32) - p) ** 2,
                         axis=-1, keepdims=True)
        inv_var_den = 1.0 / (strength * strength * (strength + 1.0))
        ll_var = jnp.sum(alpha * (strength - alpha) * inv_var_den,
                         axis=-1, keepdims=True)
        loss_dirichlet = ll_err + ll_var
    else:  # "digamma"
        loss_dirichlet = _digamma(strength) - _digamma(alpha_t)

    loss = loss_dirichlet                                         # [T, 1]

    # KL(Dir(kl_alpha) || Dir(1)) regularizer — statically skipped when the
    # annealing coefficient is exactly 0 (default DECLoss configuration).
    if annealing_coef != 0.0:
        kl_alpha = jnp.where(mask, 1.0, alpha)                    # [T, C] >= 1
        sum_kl_alpha = strength - alpha_t + 1.0                   # [T, 1]
        # Fused form of
        #   first  = lgamma(S) - sum(lgamma(kl)) - lgamma(C)
        #   second = sum((kl - 1) * (digamma(kl) - digamma(S)))
        # using sum(kl - 1) == S - C, with a single axis=-1 reduction, no
        # [T,1] -> [T,C] digamma(S) broadcast-multiply, and fused lgamma/digamma
        # evaluation on the [T,C] argument.
        lg_kl, dg_kl = _lgamma_digamma(kl_alpha)
        per_elem = (kl_alpha - 1.0) * dg_kl - lg_kl
        reduced = jnp.sum(per_elem, axis=-1, keepdims=True)
        loss_reg = (_lgamma(sum_kl_alpha)
                    - float(math.lgamma(num_classes))
                    + reduced
                    - (sum_kl_alpha - float(num_classes))
                    * _digamma(sum_kl_alpha))
        loss = loss + float(annealing_coef) * loss_reg

    if reduction == "none":
        out_ref[...] = loss                                       # [T, 1]
    else:
        if needs_mask:  # zero contribution of padded rows
            row_ids = (pl.program_id(0) * tile_n
                       + jax.lax.broadcasted_iota(jnp.int32, (tile_n, 1), 0))
            loss = jnp.where(row_ids < total_n, loss, 0.0)
        partial = jnp.sum(loss, axis=0, keepdims=True)            # [1, 1]
        out_ref[...] = jnp.broadcast_to(partial, (1, 128))


def _round_up(x, m):
    return ((x + m - 1) // m) * m


def _choose_tile_n(n, c, ev_itemsize):
    # Budget ~2 MiB of *lane-padded* VMEM per input buffer set: evidence rows
    # occupy round_up(C,128) lanes in their native dtype, int32 targets pad to
    # 128 lanes. Double-buffered this stays well under the scoped-VMEM defaults
    # on every generation (v5e/v6e/v7x) and leaves room for compiler temps.
    row_bytes = _round_up(c, 128) * ev_itemsize + 128 * 4
    max_rows = max(8, (((2 * 1024 * 1024) // row_bytes) // 8) * 8)
    if n <= max_rows:
        return _round_up(max(n, 1), 8)
    return min(1024, max_rows)


def dec_loss(evidence, targets, *, loss_type="log", reduction="mean",
             reg_weight=None, annealing_step=None, current_epoch=None,
             tile_n=None):
    """DECLoss.forward equivalent.  evidence: [N, C] float, targets: [N] int."""
    if targets.ndim != 1:
        raise NotImplementedError("DECLoss does not yet support mixup/cutmix.")
    if reg_weight is not None and reg_weight < 0:
        raise ValueError(
            f"The regularization weight should be non-negative, but got {reg_weight}.")
    if annealing_step is not None and annealing_step <= 0:
        raise ValueError(
            f"The annealing step should be positive, but got {annealing_step}.")
    if annealing_step is not None and annealing_step > 0 and current_epoch is None:
        raise ValueError("current_epoch required when annealing_step is set.")
    if reduction not in ("none", "mean", "sum"):
        raise ValueError(f"{reduction} is not a valid value for reduction.")
    if loss_type not in ("mse", "log", "digamma"):
        raise ValueError(f"{loss_type} is not a valid value for loss_type.")

    n, c = evidence.shape

    if reg_weight is None and annealing_step is None:
        annealing_coef = 0.0
    elif annealing_step is None and reg_weight > 0:
        annealing_coef = float(reg_weight)
    else:
        annealing_coef = min(1.0, float(current_epoch) / float(annealing_step))

    if tile_n is None:
        tile_n = _choose_tile_n(n, c, jnp.dtype(evidence.dtype).itemsize)
    tile_n = max(8, _round_up(tile_n, 8))
    n_pad = _round_up(n, tile_n)
    num_tiles = n_pad // tile_n

    # int32 class ids instead of a float32 one-hot (cuts input HBM traffic).
    tgt = targets.astype(jnp.int32).reshape(n, 1)
    if n_pad != n:
        pad = n_pad - n
        evidence = jnp.pad(evidence, ((0, pad), (0, 0)))  # alpha=1 on pad rows
        tgt = jnp.pad(tgt, ((0, pad), (0, 0)))

    if reduction == "none":
        out_shape = jax.ShapeDtypeStruct((n_pad, 1), jnp.float32)
        out_spec = pl.BlockSpec((tile_n, 1), lambda i: (i, 0))
    else:
        # Per-tile partial sums, lane-padded to 128 so every grid step writes a
        # distinct aligned block and the batch axis stays "parallel" (2 TCs on
        # v7x). Final reduction (and the global /N for 'mean') happens in JAX.
        out_shape = jax.ShapeDtypeStruct((1, num_tiles * 128), jnp.float32)
        out_spec = pl.BlockSpec((1, 128), lambda i: (0, i))

    kernel = functools.partial(
        _dec_loss_kernel,
        loss_type=loss_type,
        reduction=reduction,
        annealing_coef=annealing_coef,
        num_classes=c,
        tile_n=tile_n,
        total_n=n,
        needs_mask=(n_pad != n),
    )

    out = pl.pallas_call(
        kernel,
        out_shape=out_shape,
        grid=(num_tiles,),
        in_specs=[
            pl.BlockSpec((tile_n, c), lambda i: (i, 0)),
            pl.BlockSpec((tile_n, 1), lambda i: (i, 0)),
        ],
        out_specs=out_spec,
        compiler_params=pltpu.CompilerParams(
            dimension_semantics=("parallel",),
            vmem_limit_bytes=32 * 1024 * 1024,
        ),
    )(evidence, tgt)

    if reduction == "none":
        return out[:n]                                   # [N, 1], same as torch
    partials = out.reshape(num_tiles, 128)[:, 0]
    total = jnp.sum(partials)
    if reduction == "sum":
        return total
    return total / float(n)                              # mean over global N


# ---------------- pure-JAX reference (for verification) -------------------
def _ref_dec_loss(evidence, targets, *, loss_type, reduction,
                  reg_weight=None, annealing_step=None, current_epoch=None):
    from jax.scipy.special import gammaln, digamma
    n, c = evidence.shape
    t = jax.nn.one_hot(targets, c, dtype=jnp.float32)
    ev = jnp.maximum(evidence.astype(jnp.float32), 0.0)
    alpha = ev + 1.0
    strength = jnp.sum(alpha, axis=-1, keepdims=True)
    if loss_type == "log":
        ld = jnp.sum(t * (jnp.log(strength) - jnp.log(alpha)), -1, keepdims=True)
    elif loss_type == "mse":
        ld = (jnp.sum((t - alpha / strength) ** 2, -1, keepdims=True)
              + jnp.sum(alpha * (strength - alpha)
                        / (strength * strength * (strength + 1.0)),
                        -1, keepdims=True))
    else:
        ld = jnp.sum(t * (digamma(strength) - digamma(alpha)), -1, keepdims=True)
    kl_alpha = (alpha - 1.0) * (1.0 - t) + 1.0
    s = jnp.sum(kl_alpha, -1, keepdims=True)
    first = gammaln(s) - jnp.sum(gammaln(kl_alpha), -1, keepdims=True) - gammaln(float(c))
    second = jnp.sum((kl_alpha - 1.0) * (digamma(kl_alpha) - digamma(s)), -1, keepdims=True)
    if reg_weight is None and annealing_step is None:
        coef = 0.0
    elif annealing_step is None and reg_weight > 0:
        coef = float(reg_weight)
    else:
        coef = min(1.0, float(current_epoch) / float(annealing_step))
    loss = ld + coef * (first + second)
    if reduction == "mean":
        return jnp.mean(loss)
    if reduction == "sum":
        return jnp.sum(loss)
    return loss


if __name__ == "__main__":
    key = jax.random.PRNGKey(0)
    k1, k2, k3, k4 = jax.random.split(key, 4)

    N, C = 8, 16
    evidence = jax.random.normal(k1, (N, C), dtype=jnp.float32) * 2.0
    targets = jax.random.randint(k2, (N,), 0, C)

    configs = [
        dict(loss_type="log", reduction="mean", reg_weight=None,
             annealing_step=None, current_epoch=None),     # module defaults
        dict(loss_type="mse", reduction="sum", reg_weight=0.5,
             annealing_step=None, current_epoch=None),
        dict(loss_type="digamma", reduction="none", reg_weight=None,
             annealing_step=10, current_epoch=3),
    ]
    for cfg in configs:
        out = jax.block_until_ready(dec_loss(evidence, targets, **cfg))
        ref = _ref_dec_loss(evidence, targets, **cfg)
        assert jnp.allclose(out, ref, rtol=2e-4, atol=2e-5), (cfg, out, ref)

    # Multi-tile grid + padded-row masking path (forced small tile).
    N2 = 20
    evidence2 = jax.random.normal(k3, (N2, C), dtype=jnp.float32) * 2.0
    targets2 = jax.random.randint(k4, (N2,), 0, C)
    cfg2 = dict(loss_type="log", reduction="mean", reg_weight=0.25,
                annealing_step=None, current_epoch=None)
    out2 = jax.block_until_ready(dec_loss(evidence2, targets2, tile_n=8, **cfg2))
    ref2 = _ref_dec_loss(evidence2, targets2, **cfg2)
    assert jnp.allclose(out2, ref2, rtol=2e-4, atol=2e-5), (out2, ref2)

    # bf16 evidence path (DMA'd as bf16, upcast to f32 inside the kernel).
    out3 = jax.block_until_ready(
        dec_loss(evidence.astype(jnp.bfloat16), targets,
                 loss_type="log", reduction="mean"))
    ref3 = _ref_dec_loss(evidence.astype(jnp.bfloat16), targets,
                         loss_type="log", reduction="mean")
    assert jnp.allclose(out3, ref3, rtol=2e-4, atol=2e-5), (out3, ref3)

    print("KERNEL_OK")
</pallas_src>

<mosaic_0001>
module attributes {stable_mosaic.version = 11 : i64} {
  func.func @_dec_loss_kernel(%arg0: i32, %arg1: memref<8x16xf32, #tpu.memory_space<vmem>>, %arg2: memref<8x1xi32, #tpu.memory_space<vmem>>, %arg3: memref<1x128xf32, #tpu.memory_space<vmem>>) attributes {dimension_semantics = [#tpu.dimension_semantics<parallel>], iteration_bounds = array<i64: 1>, scalar_prefetch = 0 : i64, scratch_operands = 0 : i64, tpu.core_type = #tpu.core_type<tc>, window_params = [{transform_indices = @transform_0, window_bounds = array<i64: 8, 16>}, {transform_indices = @transform_1, window_bounds = array<i64: 8, 1>}, {transform_indices = @transform_2, window_bounds = array<i64: 1, 128>}]} {
    %c0 = arith.constant 0 : index
    %c0_0 = arith.constant 0 : index
    %0 = vector.load %arg1[%c0, %c0_0] : memref<8x16xf32, #tpu.memory_space<vmem>>, vector<8x16xf32>
    %cst = arith.constant 0.000000e+00 : f32
    %1 = vector.broadcast %cst : f32 to vector<8x16xf32>
    %2 = arith.maximumf %0, %1 : vector<8x16xf32>
    %cst_1 = arith.constant 1.000000e+00 : f32
    %3 = vector.broadcast %cst_1 : f32 to vector<8x16xf32>
    %4 = arith.addf %2, %3 : vector<8x16xf32>
    %cst_2 = arith.constant dense<0.000000e+00> : vector<8xf32>
    %5 = vector.multi_reduction <add>, %4, %cst_2 [1] : vector<8x16xf32> to vector<8xf32>
    %6 = vector.shape_cast %5 : vector<8xf32> to vector<8x1xf32>
    %c0_3 = arith.constant 0 : index
    %c0_4 = arith.constant 0 : index
    %7 = vector.load %arg2[%c0_3, %c0_4] : memref<8x1xi32, #tpu.memory_space<vmem>>, vector<8x1xi32>
    %8 = tpu.iota {dimensions = array<i32: 1>} : vector<8x16xi32>
    %9 = vector.broadcast %7 : vector<8x1xi32> to vector<8x16xi32>
    %10 = arith.cmpi eq, %8, %9 : vector<8x16xi32>
    %cst_5 = arith.constant 0.000000e+00 : f32
    %11 = vector.broadcast %cst_5 : f32 to vector<8x16xf32>
    %12 = arith.select %10, %4, %11 : vector<8x16xi1>, vector<8x16xf32>
    %cst_6 = arith.constant dense<0.000000e+00> : vector<8xf32>
    %13 = vector.multi_reduction <add>, %12, %cst_6 [1] : vector<8x16xf32> to vector<8xf32>
    %14 = vector.shape_cast %13 : vector<8xf32> to vector<8x1xf32>
    %15 = math.log %6 : vector<8x1xf32>
    %16 = math.log %14 : vector<8x1xf32>
    %17 = arith.subf %15, %16 : vector<8x1xf32>
    %cst_7 = arith.constant dense<0.000000e+00> : vector<1xf32>
    %18 = vector.multi_reduction <add>, %17, %cst_7 [0] : vector<8x1xf32> to vector<1xf32>
    %19 = vector.shape_cast %18 : vector<1xf32> to vector<1x1xf32>
    %20 = vector.shape_cast %19 : vector<1x1xf32> to vector<1x1xf32>
    %21 = vector.broadcast %20 : vector<1x1xf32> to vector<1x128xf32>
    %c0_8 = arith.constant 0 : index
    %c0_9 = arith.constant 0 : index
    %22 = vector.load %arg3[%c0_8, %c0_9] : memref<1x128xf32, #tpu.memory_space<vmem>>, vector<1x128xf32>
    tpu.vector_store %arg3[%c0_8, %c0_9], %21 {strides = array<i32>} : memref<1x128xf32, #tpu.memory_space<vmem>>, vector<1x128xf32>,
    return
  }
  func.func @transform_0(%arg0: i32) -> (i32, i32) {
    %c0_i32 = arith.constant 0 : i32
    %c0_i32_0 = arith.constant 0 : i32
    return %arg0, %c0_i32 : i32, i32
  }
  func.func @transform_1(%arg0: i32) -> (i32, i32) {
    %c0_i32 = arith.constant 0 : i32
    %c0_i32_0 = arith.constant 0 : i32
    return %arg0, %c0_i32 : i32, i32
  }
  func.func @transform_2(%arg0: i32) -> (i32, i32) {
    %c0_i32 = arith.constant 0 : i32
    %c0_i32_0 = arith.constant 0 : i32
    return %c0_i32, %arg0 : i32, i32
  }
}

</mosaic_0001>

<llo_original>
// kernel: tpu_custom_call.1
$region0: #{tpu_custom_call.1}
  #allocation0 [shape = 'u32[]', space=smem, size = 0x4, offset = 0x4, fixed_abs, tag = 'smem constant byte address 0x4 - core index']
  #allocation1 [shape = 'u32[144,128]{1,0:T(1,128)}', space=vmem, size = 0x12000, scoped, tag = 'internal scratch']
  %s0 = inlined_call_operand.vmem [shape: f32[8,16], index: 0, kind: input, shape index: {}]
  %s1 = inlined_call_operand.vmem [shape: s32[8,1], index: 1, kind: input, shape index: {}]
  %s2 = inlined_call_operand.hbm [shape: f32[1,128], index: 2, kind: output, shape index: {}]
  %s3 = sld [smem:[#allocation0]]
  $region18: #{tpu_custom_call.1} parent=0
    _
  %s5 = ssub.s32 1, %s3
  %s6 = scalar_select 0, %s5, %s3
  $region1: #{tpu_custom_call.1} parent=0
    #allocation2 [shape = 'u8[512]{0}', space=vmem, size = 0x400, scoped, tag = 'output window, operand 0, single buffered']
    #allocation3 [shape = 's32[1]{0}', space=sflag, size = 0x4, scoped, tag = 'scoped memory for tpu_custom_call.1']
    %7 = vsyncpa [#allocation3], 0
    // Predicated region
    $region2: #{tpu_custom_call.1} parent=1 // pred_check
      _
    $region3: #{tpu_custom_call.1} parent=1 // pred_check_branch
      %9 = sbr.rel (0) target = $region5
    $region4: #{tpu_custom_call.1} parent=1 // pred_region
      _
    $region5: #{tpu_custom_call.1} parent=1 // pred_fallthru
      _
    // Predicated region
    $region6: #{tpu_custom_call.1} parent=1 // pred_check
      _
    $region7: #{tpu_custom_call.1} parent=1 // pred_check_branch
      %11 = sbr.rel (0) target = $region9
    $region8: #{tpu_custom_call.1} parent=1 // pred_region
      _
    $region9: #{tpu_custom_call.1} parent=1 // pred_fallthru
      _
    %v12 = vld [vmem:[%s0] sm:$0xff]
    %v13 = vmax.f32 %v12, 0.0
    %v14 = vadd.f32 %v13, 1.0
    %vm15 = vcmask 130048
    %v16 = vsel %vm15, %v14, 0.0
    %17 = vadd.xlane.f32.xlu0 %v16
    %v18 = vpop.xlane.xlu0 %17
    %v19 = vld [vmem:[%s1] sm:$0xff]
    %v20 = vlaneseq
    %v21 = vand.u32 %v20, 127
    %22 = vset.pattern.permute.xlu0 0
    %23 = vperm.xlu0 %22, %v19
    %v24 = vpop.permute.xlu0 %23
    %vm25 = vcmp.eq.s32.totalorder %v21, %v24
    %v26 = vsel %vm25, %v14, 0.0
    %v27 = vsel %vm15, %v26, 0.0
    %28 = vadd.xlane.f32.xlu0 %v27
    %v29 = vpop.xlane.xlu0 %28
    %v30 = vlog2.pop %v18
    %v31 = vmul.f32 %v30, 0.6931472
    %v32 = vlog2.pop %v29
    %v33 = vmul.f32 %v32, 0.6931472
    %v34 = vsub.f32 %v31, %v33
    %v35 = vrot.slane %v34, 4
    %v36 = vadd.f32 %v34, %v35
    %v37 = vrot.slane %v36, 2
    %v38 = vadd.f32 %v36, %v37
    %v39 = vrot.slane %v38, 1
    %v40 = vadd.f32 %v38, %v39
    %41 = vst [vmem:[#allocation2] sm:$0x1] %v40
    // Predicated region
    $region10: #{tpu_custom_call.1} parent=1 // pred_check
      _
    $region11: #{tpu_custom_call.1} parent=1 // pred_check_branch
      %43 = sbr.rel (0) target = $region13
    $region12: #{tpu_custom_call.1} parent=1 // pred_region
      %s45 = ssub.s32 16, 16
      %46 = vsyncadd [#allocation3], %s45
      %s48 = sshll.u32 [#allocation2], 4
      %s49 = int_to_ptr.vmem [resolvable:$true] %s48
      %51 = dma.vmem_to_hbm [thread:$0]  %s49, 16, %s2, [#allocation3]
    $region13: #{tpu_custom_call.1} parent=1 // pred_fallthru
      _
    // Predicated region
    $region14: #{tpu_custom_call.1} parent=1 // pred_check
      _
    $region15: #{tpu_custom_call.1} parent=1 // pred_check_branch
      %53 = sbr.rel (0) target = $region17
    $region16: #{tpu_custom_call.1} parent=1 // pred_region
      %54 = dma.done [#allocation3], 16
    $region17: #{tpu_custom_call.1} parent=1 // pred_fallthru
      _
    %55 = vsyncpa [#allocation3], 1

</llo_original>
